<compile_context>
chip_gen: v7x
topology: tpu7x:2x2x1
jax: 0.10.0
libtpu: 0.0.40
codegen_flags: <defaults>
</compile_context>

<pallas_src>
import functools

import jax
import jax.numpy as jnp
from jax.experimental import pallas as pl
from jax.experimental.pallas import tpu as pltpu

LANE = 128          # lane width: pad hidden/class dims to this
TILE_B_MAX = 2048   # max batch tile (fits all of v5e/v6e/v7x with explicit vmem limit)


def _round_up(x, m):
    return ((x + m - 1) // m) * m


def _cdiv(a, b):
    return -(-a // b)


def _pad2d(a, rows, cols):
    return jnp.pad(a, ((0, rows - a.shape[0]), (0, cols - a.shape[1])))


def mlp3_kernel(x_ref, w1_ref, w_ref, b_ref, o_ref):
    # Cast x to bf16 on-chip (cheap VPU work hidden under the x DMA); f32 accumulate.
    x = x_ref[...].astype(jnp.bfloat16)

    # fc1 + ReLU  (K = prod_size, dominant matmul)
    h = jnp.dot(x, w1_ref[...], preferred_element_type=jnp.float32)
    h = jnp.maximum(h + b_ref[0:1, :], 0.0)
    # fc2 + ReLU  (bf16 operands, f32 accumulate)
    h = jnp.dot(h.astype(jnp.bfloat16), w_ref[0], preferred_element_type=jnp.float32)
    h = jnp.maximum(h + b_ref[1:2, :], 0.0)
    # fc3 + ReLU
    h = jnp.dot(h.astype(jnp.bfloat16), w_ref[1], preferred_element_type=jnp.float32)
    h = jnp.maximum(h + b_ref[2:3, :], 0.0)
    # fc4 (no activation)
    h = jnp.dot(h.astype(jnp.bfloat16), w_ref[2], preferred_element_type=jnp.float32)
    o_ref[...] = (h + b_ref[3:4, :]).astype(o_ref.dtype)


@functools.partial(jax.jit, static_argnames=("num_classes",))
def custom_mlp3(x, params, num_classes=10):
    """x: (B, C, H, W) float32. params: dict w1..w4 (in,out), b1..b4 (1,out)."""
    B = x.shape[0]
    prod_size = x.shape[1] * x.shape[2] * x.shape[3]
    x_flat = x.reshape(B, prod_size)  # == x.view(-1, prod_size)

    # ---- tiling / padding ---------------------------------------------------
    K_pad = _round_up(prod_size, LANE)
    # Cap tile at ceil(B/2) (rounded to sublane multiple) so the parallel grid
    # has >=2 steps whenever B > 8 (v7x megacore), but never exceed TILE_B_MAX.
    tile_b = max(8, min(TILE_B_MAX, _round_up(_cdiv(B, 2), 8)))
    B_pad = _round_up(B, tile_b)

    # Only pad x when it is not a no-op (keeps f32; kernel casts to bf16 on-chip).
    if (B_pad, K_pad) != (B, prod_size):
        x_p = jnp.pad(x_flat, ((0, B_pad - B), (0, K_pad - prod_size)))
    else:
        x_p = x_flat

    # Weights: zero-pad to 128-wide lanes (and 128-tall for fc2..fc4), bf16.
    w1 = _pad2d(params["w1"], K_pad, LANE).astype(jnp.bfloat16)
    w_small = jnp.stack(
        [_pad2d(params[f"w{i}"], LANE, LANE) for i in (2, 3, 4)]
    ).astype(jnp.bfloat16)                                   # (3, 128, 128)
    biases = jnp.stack(
        [jnp.pad(params[f"b{i}"].reshape(-1),
                 (0, LANE - params[f"b{i}"].size)) for i in (1, 2, 3, 4)]
    ).astype(jnp.float32)                                    # (4, 128)

    grid = (B_pad // tile_b,)

    # x / out stream per grid step; weights & biases are pinned resident via
    # constant index_maps.
    in_specs = [
        pl.BlockSpec((tile_b, K_pad), lambda i: (i, 0)),         # x (f32)
        pl.BlockSpec((K_pad, LANE), lambda i: (0, 0)),           # w1 (bf16)
        pl.BlockSpec((3, LANE, LANE), lambda i: (0, 0, 0)),      # w2..w4 (bf16)
        pl.BlockSpec((4, LANE), lambda i: (0, 0)),               # b1..b4 (f32)
    ]
    out_spec = pl.BlockSpec((tile_b, LANE), lambda i: (i, 0))    # out (bf16)

    # ---- VMEM budget (double buffers + resident weights + intermediates) ----
    vmem_bytes = (
        2 * tile_b * K_pad * 4          # x double buffer (f32)
        + 2 * tile_b * LANE * 2         # out double buffer (bf16)
        + 2 * K_pad * LANE * 2          # w1 (bf16)
        + 2 * 3 * LANE * LANE * 2       # w2..w4 (bf16)
        + 2 * 8 * LANE * 4              # biases (f32, sublane-padded)
        + 4 * tile_b * LANE * 4         # in-kernel h intermediates (headroom)
    )
    vmem_limit = max(min(vmem_bytes + (4 << 20), 48 << 20), 16 << 20)

    flops = 2 * B_pad * (K_pad * LANE + 3 * LANE * LANE)
    bytes_accessed = (
        B_pad * K_pad * 4                    # x read (f32)
        + K_pad * LANE * 2                   # w1 (bf16)
        + 3 * LANE * LANE * 2                # w2..w4 (bf16)
        + 4 * LANE * 4                       # biases (f32)
        + B_pad * LANE * 2                   # output write (bf16)
    )
    cost = pl.CostEstimate(flops=flops, transcendentals=0,
                           bytes_accessed=bytes_accessed)

    out = pl.pallas_call(
        mlp3_kernel,
        out_shape=jax.ShapeDtypeStruct((B_pad, LANE), jnp.bfloat16),
        grid=grid,
        in_specs=in_specs,
        out_specs=out_spec,
        compiler_params=pltpu.CompilerParams(
            dimension_semantics=("parallel",),
            vmem_limit_bytes=vmem_limit),
        cost_estimate=cost,
    )(x_p, w1, w_small, biases)

    # TODO(synk): for B just above a multiple of tile_b a full zero tile is
    # streamed; a remainder-tile path could avoid that extra pass.
    return out[:B, :num_classes].astype(jnp.float32)


def init_params(key, prod_size, num_classes=10):
    """Deterministic init; weights stored as (in, out), biases as (1, out)."""
    dims = [(prod_size, 64), (64, 32), (32, 16), (16, num_classes)]
    params = {}
    for i, (fan_in, fan_out) in enumerate(dims, start=1):
        key, kw, kb = jax.random.split(key, 3)
        bound = 1.0 / jnp.sqrt(fan_in)  # matches nn.Linear default uniform init
        params[f"w{i}"] = jax.random.uniform(
            kw, (fan_in, fan_out), jnp.float32, -bound, bound)
        params[f"b{i}"] = jax.random.uniform(
            kb, (1, fan_out), jnp.float32, -bound, bound)
    return params


if __name__ == "__main__":
    # img_size = (4, 16, 16) -> prod_size = 1024
    B, C, H, W = 2, 4, 16, 16
    num_classes = 10
    prod_size = C * H * W

    key = jax.random.PRNGKey(0)
    key, kx = jax.random.split(key)
    x = jax.random.normal(kx, (B, C, H, W), jnp.float32)
    params = init_params(key, prod_size, num_classes)

    out = custom_mlp3(x, params, num_classes=num_classes)
    jax.block_until_ready(out)

    # Pure-JAX f32 reference of the original module's math. Tolerance is
    # loosened because the kernel uses bf16 matmul operands (f32 accumulate)
    # and a bf16 output slab.
    xf = x.reshape(B, prod_size)
    ref = jnp.maximum(xf @ params["w1"] + params["b1"], 0.0)
    ref = jnp.maximum(ref @ params["w2"] + params["b2"], 0.0)
    ref = jnp.maximum(ref @ params["w3"] + params["b3"], 0.0)
    ref = ref @ params["w4"] + params["b4"]

    assert out.shape == (B, num_classes)
    assert jnp.allclose(out, ref, atol=2e-2, rtol=2e-2), (
        jnp.max(jnp.abs(out - ref)))

    print("KERNEL_OK")
</pallas_src>

<mosaic_0001>
module attributes {stable_mosaic.version = 11 : i64} {
  func.func @mlp3_kernel(%arg0: i32, %arg1: memref<8x1024xf32, #tpu.memory_space<vmem>>, %arg2: memref<1024x128xbf16, #tpu.memory_space<vmem>>, %arg3: memref<3x128x128xbf16, #tpu.memory_space<vmem>>, %arg4: memref<4x128xf32, #tpu.memory_space<vmem>>, %arg5: memref<8x128xbf16, #tpu.memory_space<vmem>>) attributes {dimension_semantics = [#tpu.dimension_semantics<parallel>], iteration_bounds = array<i64: 1>, scalar_prefetch = 0 : i64, scratch_operands = 0 : i64, tpu.core_type = #tpu.core_type<tc>, window_params = [{transform_indices = @transform_0, window_bounds = array<i64: 8, 1024>}, {pipeline_mode = #tpu.pipeline_mode<synchronous>, transform_indices = @transform_1, window_bounds = array<i64: 1024, 128>}, {pipeline_mode = #tpu.pipeline_mode<synchronous>, transform_indices = @transform_2, window_bounds = array<i64: 3, 128, 128>}, {pipeline_mode = #tpu.pipeline_mode<synchronous>, transform_indices = @transform_3, window_bounds = array<i64: 4, 128>}, {transform_indices = @transform_4, window_bounds = array<i64: 8, 128>}]} {
    %c0 = arith.constant 0 : index
    %c0_0 = arith.constant 0 : index
    %0 = vector.load %arg1[%c0, %c0_0] : memref<8x1024xf32, #tpu.memory_space<vmem>>, vector<8x1024xf32>
    %1 = arith.truncf %0 : vector<8x1024xf32> to vector<8x1024xbf16>
    %c0_1 = arith.constant 0 : index
    %c0_2 = arith.constant 0 : index
    %2 = vector.load %arg2[%c0_1, %c0_2] : memref<1024x128xbf16, #tpu.memory_space<vmem>>, vector<1024x128xbf16>
    %cst = arith.constant dense<0.000000e+00> : vector<8x128xf32>
    %3 = tpu.matmul %1, %2, %cst {dimension_numbers = #tpu.dot_dimension_numbers<[1], [0], [0], [1], [0, 0, 1, 1], [], []>} : vector<8x1024xbf16>, vector<1024x128xbf16>, vector<8x128xf32> -> vector<8x128xf32>
    %c0_3 = arith.constant 0 : index
    %c0_4 = arith.constant 0 : index
    %4 = vector.load %arg4[%c0_3, %c0_4] : memref<4x128xf32, #tpu.memory_space<vmem>>, vector<1x128xf32>
    %5 = vector.broadcast %4 : vector<1x128xf32> to vector<8x128xf32>
    %6 = arith.addf %3, %5 : vector<8x128xf32>
    %cst_5 = arith.constant 0.000000e+00 : f32
    %7 = vector.broadcast %cst_5 : f32 to vector<8x128xf32>
    %8 = arith.maximumf %6, %7 : vector<8x128xf32>
    %9 = arith.truncf %8 : vector<8x128xf32> to vector<8x128xbf16>
    %c0_6 = arith.constant 0 : index
    %c0_7 = arith.constant 0 : index
    %c0_8 = arith.constant 0 : index
    %10 = vector.load %arg3[%c0_6, %c0_7, %c0_8] : memref<3x128x128xbf16, #tpu.memory_space<vmem>>, vector<1x128x128xbf16>
    %11 = vector.shape_cast %10 : vector<1x128x128xbf16> to vector<128x128xbf16>
    %cst_9 = arith.constant dense<0.000000e+00> : vector<8x128xf32>
    %12 = tpu.matmul %9, %11, %cst_9 {dimension_numbers = #tpu.dot_dimension_numbers<[1], [0], [0], [1], [0, 0, 1, 1], [], []>} : vector<8x128xbf16>, vector<128x128xbf16>, vector<8x128xf32> -> vector<8x128xf32>
    %c1 = arith.constant 1 : index
    %c0_10 = arith.constant 0 : index
    %13 = vector.load %arg4[%c1, %c0_10] : memref<4x128xf32, #tpu.memory_space<vmem>>, vector<1x128xf32>
    %14 = vector.broadcast %13 : vector<1x128xf32> to vector<8x128xf32>
    %15 = arith.addf %12, %14 : vector<8x128xf32>
    %cst_11 = arith.constant 0.000000e+00 : f32
    %16 = vector.broadcast %cst_11 : f32 to vector<8x128xf32>
    %17 = arith.maximumf %15, %16 : vector<8x128xf32>
    %18 = arith.truncf %17 : vector<8x128xf32> to vector<8x128xbf16>
    %c1_12 = arith.constant 1 : index
    %c0_13 = arith.constant 0 : index
    %c0_14 = arith.constant 0 : index
    %19 = vector.load %arg3[%c1_12, %c0_13, %c0_14] : memref<3x128x128xbf16, #tpu.memory_space<vmem>>, vector<1x128x128xbf16>
    %20 = vector.shape_cast %19 : vector<1x128x128xbf16> to vector<128x128xbf16>
    %cst_15 = arith.constant dense<0.000000e+00> : vector<8x128xf32>
    %21 = tpu.matmul %18, %20, %cst_15 {dimension_numbers = #tpu.dot_dimension_numbers<[1], [0], [0], [1], [0, 0, 1, 1], [], []>} : vector<8x128xbf16>, vector<128x128xbf16>, vector<8x128xf32> -> vector<8x128xf32>
    %c2 = arith.constant 2 : index
    %c0_16 = arith.constant 0 : index
    %22 = vector.load %arg4[%c2, %c0_16] : memref<4x128xf32, #tpu.memory_space<vmem>>, vector<1x128xf32>
    %23 = vector.broadcast %22 : vector<1x128xf32> to vector<8x128xf32>
    %24 = arith.addf %21, %23 : vector<8x128xf32>
    %cst_17 = arith.constant 0.000000e+00 : f32
    %25 = vector.broadcast %cst_17 : f32 to vector<8x128xf32>
    %26 = arith.maximumf %24, %25 : vector<8x128xf32>
    %27 = arith.truncf %26 : vector<8x128xf32> to vector<8x128xbf16>
    %c2_18 = arith.constant 2 : index
    %c0_19 = arith.constant 0 : index
    %c0_20 = arith.constant 0 : index
    %28 = vector.load %arg3[%c2_18, %c0_19, %c0_20] : memref<3x128x128xbf16, #tpu.memory_space<vmem>>, vector<1x128x128xbf16>
    %29 = vector.shape_cast %28 : vector<1x128x128xbf16> to vector<128x128xbf16>
    %cst_21 = arith.constant dense<0.000000e+00> : vector<8x128xf32>
    %30 = tpu.matmul %27, %29, %cst_21 {dimension_numbers = #tpu.dot_dimension_numbers<[1], [0], [0], [1], [0, 0, 1, 1], [], []>} : vector<8x128xbf16>, vector<128x128xbf16>, vector<8x128xf32> -> vector<8x128xf32>
    %c3 = arith.constant 3 : index
    %c0_22 = arith.constant 0 : index
    %31 = vector.load %arg4[%c3, %c0_22] : memref<4x128xf32, #tpu.memory_space<vmem>>, vector<1x128xf32>
    %32 = vector.broadcast %31 : vector<1x128xf32> to vector<8x128xf32>
    %33 = arith.addf %30, %32 : vector<8x128xf32>
    %34 = arith.truncf %33 : vector<8x128xf32> to vector<8x128xbf16>
    %c0_23 = arith.constant 0 : index
    %c0_24 = arith.constant 0 : index
    %35 = vector.load %arg5[%c0_23, %c0_24] : memref<8x128xbf16, #tpu.memory_space<vmem>>, vector<8x128xbf16>
    tpu.vector_store %arg5[%c0_23, %c0_24], %34 {strides = array<i32>} : memref<8x128xbf16, #tpu.memory_space<vmem>>, vector<8x128xbf16>,
    return
  }
  func.func @transform_0(%arg0: i32) -> (i32, i32) {
    %c0_i32 = arith.constant 0 : i32
    %c0_i32_0 = arith.constant 0 : i32
    return %arg0, %c0_i32 : i32, i32
  }
  func.func @transform_1(%arg0: i32) -> (i32, i32) {
    %c0_i32 = arith.constant 0 : i32
    %c0_i32_0 = arith.constant 0 : i32
    %c0_i32_1 = arith.constant 0 : i32
    return %c0_i32, %c0_i32_0 : i32, i32
  }
  func.func @transform_2(%arg0: i32) -> (i32, i32, i32) {
    %c0_i32 = arith.constant 0 : i32
    %c0_i32_0 = arith.constant 0 : i32
    %c0_i32_1 = arith.constant 0 : i32
    %c0_i32_2 = arith.constant 0 : i32
    return %c0_i32, %c0_i32_0, %c0_i32_1 : i32, i32, i32
  }
  func.func @transform_3(%arg0: i32) -> (i32, i32) {
    %c0_i32 = arith.constant 0 : i32
    %c0_i32_0 = arith.constant 0 : i32
    %c0_i32_1 = arith.constant 0 : i32
    return %c0_i32, %c0_i32_0 : i32, i32
  }
  func.func @transform_4(%arg0: i32) -> (i32, i32) {
    %c0_i32 = arith.constant 0 : i32
    %c0_i32_0 = arith.constant 0 : i32
    return %arg0, %c0_i32 : i32, i32
  }
}

</mosaic_0001>

<llo_original>
// kernel: custom_mlp3.1
$region0: #{custom_mlp3.1}
  #allocation0 [shape = 'u32[]', space=smem, size = 0x4, offset = 0x4, fixed_abs, tag = 'smem constant byte address 0x4 - core index']
  #allocation1 [shape = 'u32[144,128]{1,0:T(1,128)}', space=vmem, size = 0x12000, scoped, tag = 'internal scratch']
  %s0 = inlined_call_operand.vmem [shape: f32[8,1024], index: 0, kind: input, shape index: {}]
  %s1 = inlined_call_operand.vmem [shape: bf16[1024,128], index: 1, kind: input, shape index: {}]
  %s2 = inlined_call_operand.vmem [shape: bf16[3,128,128], index: 2, kind: input, shape index: {}]
  %s3 = inlined_call_operand.vmem [shape: f32[4,128], index: 3, kind: input, shape index: {}]
  %s4 = inlined_call_operand.vmem [shape: bf16[8,128], index: 4, kind: output, shape index: {}]
  %s5 = sld [smem:[#allocation0]]
  $region26: #{custom_mlp3.1} parent=0
    _
  %s7 = ssub.s32 1, %s5
  %s8 = scalar_select 0, %s7, %s5
  // Predicated region
  $region2: #{custom_mlp3.1} parent=0 // pred_check
    _
  $region3: #{custom_mlp3.1} parent=0 // pred_check_branch
    %10 = sbr.rel (0) target = $region5
  $region4: #{custom_mlp3.1} parent=0 // pred_region
    _
  $region5: #{custom_mlp3.1} parent=0 // pred_fallthru
    _
  // Predicated region
  $region6: #{custom_mlp3.1} parent=0 // pred_check
    _
  $region7: #{custom_mlp3.1} parent=0 // pred_check_branch
    %12 = sbr.rel (0) target = $region9
  $region8: #{custom_mlp3.1} parent=0 // pred_region
    _
  $region9: #{custom_mlp3.1} parent=0 // pred_fallthru
    _
  // Predicated region
  $region10: #{custom_mlp3.1} parent=0 // pred_check
    _
  $region11: #{custom_mlp3.1} parent=0 // pred_check_branch
    %14 = sbr.rel (0) target = $region13
  $region12: #{custom_mlp3.1} parent=0 // pred_region
    _
  $region13: #{custom_mlp3.1} parent=0 // pred_fallthru
    _
  // Predicated region
  $region14: #{custom_mlp3.1} parent=0 // pred_check
    _
  $region15: #{custom_mlp3.1} parent=0 // pred_check_branch
    %16 = sbr.rel (0) target = $region17
  $region16: #{custom_mlp3.1} parent=0 // pred_region
    _
  $region17: #{custom_mlp3.1} parent=0 // pred_fallthru
    _
  %v18 = vld [vmem:[%s0] sm:$0xff]
  %v19 = vld [vmem:[%s0 + $0x8] sm:$0xff]
  %v20 = vld [vmem:[%s0 + $0x10] sm:$0xff]
  %v21 = vld [vmem:[%s0 + $0x18] sm:$0xff]
  %v22 = vld [vmem:[%s0 + $0x20] sm:$0xff]
  %v23 = vld [vmem:[%s0 + $0x28] sm:$0xff]
  %v24 = vld [vmem:[%s0 + $0x30] sm:$0xff]
  %v25 = vld [vmem:[%s0 + $0x38] sm:$0xff]
  %v26 = vpack.c.bf16 %v18, %v18
  %v27 = vpack.c.bf16 %v19, %v19
  %v28 = vpack.c.bf16 %v20, %v20
  %v29 = vpack.c.bf16 %v21, %v21
  %v30 = vpack.c.bf16 %v22, %v22
  %v31 = vpack.c.bf16 %v23, %v23
  %v32 = vpack.c.bf16 %v24, %v24
  %v33 = vpack.c.bf16 %v25, %v25
  %v34 = vld [vmem:[%s1] sm:$0xf]
  %v35 = vld [vmem:[%s1 + $0x4] sm:$0xf]
  %v36 = vld [vmem:[%s1 + $0x8] sm:$0xf]
  %v37 = vld [vmem:[%s1 + $0xc] sm:$0xf]
  %v38 = vld [vmem:[%s1 + $0x10] sm:$0xf]
  %v39 = vld [vmem:[%s1 + $0x14] sm:$0xf]
  %v40 = vld [vmem:[%s1 + $0x18] sm:$0xf]
  %v41 = vld [vmem:[%s1 + $0x1c] sm:$0xf]
  %v42 = vld [vmem:[%s1 + $0x20] sm:$0xf]
  %v43 = vld [vmem:[%s1 + $0x24] sm:$0xf]
  %v44 = vld [vmem:[%s1 + $0x28] sm:$0xf]
  %v45 = vld [vmem:[%s1 + $0x2c] sm:$0xf]
  %v46 = vld [vmem:[%s1 + $0x30] sm:$0xf]
  %v47 = vld [vmem:[%s1 + $0x34] sm:$0xf]
  %v48 = vld [vmem:[%s1 + $0x38] sm:$0xf]
  %v49 = vld [vmem:[%s1 + $0x3c] sm:$0xf]
  %v50 = vld [vmem:[%s1 + $0x40] sm:$0xf]
  %v51 = vld [vmem:[%s1 + $0x44] sm:$0xf]
  %v52 = vld [vmem:[%s1 + $0x48] sm:$0xf]
  %v53 = vld [vmem:[%s1 + $0x4c] sm:$0xf]
  %v54 = vld [vmem:[%s1 + $0x50] sm:$0xf]
  %v55 = vld [vmem:[%s1 + $0x54] sm:$0xf]
  %v56 = vld [vmem:[%s1 + $0x58] sm:$0xf]
  %v57 = vld [vmem:[%s1 + $0x5c] sm:$0xf]
  %v58 = vld [vmem:[%s1 + $0x60] sm:$0xf]
  %v59 = vld [vmem:[%s1 + $0x64] sm:$0xf]
  %v60 = vld [vmem:[%s1 + $0x68] sm:$0xf]
  %v61 = vld [vmem:[%s1 + $0x6c] sm:$0xf]
  %v62 = vld [vmem:[%s1 + $0x70] sm:$0xf]
  %v63 = vld [vmem:[%s1 + $0x74] sm:$0xf]
  %v64 = vld [vmem:[%s1 + $0x78] sm:$0xf]
  %v65 = vld [vmem:[%s1 + $0x7c] sm:$0xf]
  %v66 = vld [vmem:[%s1 + $0x80] sm:$0xf]
  %v67 = vld [vmem:[%s1 + $0x84] sm:$0xf]
  %v68 = vld [vmem:[%s1 + $0x88] sm:$0xf]
  %v69 = vld [vmem:[%s1 + $0x8c] sm:$0xf]
  %v70 = vld [vmem:[%s1 + $0x90] sm:$0xf]
  %v71 = vld [vmem:[%s1 + $0x94] sm:$0xf]
  %v72 = vld [vmem:[%s1 + $0x98] sm:$0xf]
  %v73 = vld [vmem:[%s1 + $0x9c] sm:$0xf]
  %v74 = vld [vmem:[%s1 + $0xa0] sm:$0xf]
  %v75 = vld [vmem:[%s1 + $0xa4] sm:$0xf]
  %v76 = vld [vmem:[%s1 + $0xa8] sm:$0xf]
  %v77 = vld [vmem:[%s1 + $0xac] sm:$0xf]
  %v78 = vld [vmem:[%s1 + $0xb0] sm:$0xf]
  %v79 = vld [vmem:[%s1 + $0xb4] sm:$0xf]
  %v80 = vld [vmem:[%s1 + $0xb8] sm:$0xf]
  %v81 = vld [vmem:[%s1 + $0xbc] sm:$0xf]
  %v82 = vld [vmem:[%s1 + $0xc0] sm:$0xf]
  %v83 = vld [vmem:[%s1 + $0xc4] sm:$0xf]
  %v84 = vld [vmem:[%s1 + $0xc8] sm:$0xf]
  %v85 = vld [vmem:[%s1 + $0xcc] sm:$0xf]
  %v86 = vld [vmem:[%s1 + $0xd0] sm:$0xf]
  %v87 = vld [vmem:[%s1 + $0xd4] sm:$0xf]
  %v88 = vld [vmem:[%s1 + $0xd8] sm:$0xf]
  %v89 = vld [vmem:[%s1 + $0xdc] sm:$0xf]
  %v90 = vld [vmem:[%s1 + $0xe0] sm:$0xf]
  %v91 = vld [vmem:[%s1 + $0xe4] sm:$0xf]
  %v92 = vld [vmem:[%s1 + $0xe8] sm:$0xf]
  %v93 = vld [vmem:[%s1 + $0xec] sm:$0xf]
  %v94 = vld [vmem:[%s1 + $0xf0] sm:$0xf]
  %v95 = vld [vmem:[%s1 + $0xf4] sm:$0xf]
  %v96 = vld [vmem:[%s1 + $0xf8] sm:$0xf]
  %v97 = vld [vmem:[%s1 + $0xfc] sm:$0xf]
  %v98 = vld [vmem:[%s1 + $0x100] sm:$0xf]
  %v99 = vld [vmem:[%s1 + $0x104] sm:$0xf]
  %v100 = vld [vmem:[%s1 + $0x108] sm:$0xf]
  %v101 = vld [vmem:[%s1 + $0x10c] sm:$0xf]
  %v102 = vld [vmem:[%s1 + $0x110] sm:$0xf]
  %v103 = vld [vmem:[%s1 + $0x114] sm:$0xf]
  %v104 = vld [vmem:[%s1 + $0x118] sm:$0xf]
  %v105 = vld [vmem:[%s1 + $0x11c] sm:$0xf]
  %v106 = vld [vmem:[%s1 + $0x120] sm:$0xf]
  %v107 = vld [vmem:[%s1 + $0x124] sm:$0xf]
  %v108 = vld [vmem:[%s1 + $0x128] sm:$0xf]
  %v109 = vld [vmem:[%s1 + $0x12c] sm:$0xf]
  %v110 = vld [vmem:[%s1 + $0x130] sm:$0xf]
  %v111 = vld [vmem:[%s1 + $0x134] sm:$0xf]
  %v112 = vld [vmem:[%s1 + $0x138] sm:$0xf]
  %v113 = vld [vmem:[%s1 + $0x13c] sm:$0xf]
  %v114 = vld [vmem:[%s1 + $0x140] sm:$0xf]
  %v115 = vld [vmem:[%s1 + $0x144] sm:$0xf]
  %v116 = vld [vmem:[%s1 + $0x148] sm:$0xf]
  %v117 = vld [vmem:[%s1 + $0x14c] sm:$0xf]
  %v118 = vld [vmem:[%s1 + $0x150] sm:$0xf]
  %v119 = vld [vmem:[%s1 + $0x154] sm:$0xf]
  %v120 = vld [vmem:[%s1 + $0x158] sm:$0xf]
  %v121 = vld [vmem:[%s1 + $0x15c] sm:$0xf]
  %v122 = vld [vmem:[%s1 + $0x160] sm:$0xf]
  %v123 = vld [vmem:[%s1 + $0x164] sm:$0xf]
  %v124 = vld [vmem:[%s1 + $0x168] sm:$0xf]
  %v125 = vld [vmem:[%s1 + $0x16c] sm:$0xf]
  %v126 = vld [vmem:[%s1 + $0x170] sm:$0xf]
  %v127 = vld [vmem:[%s1 + $0x174] sm:$0xf]
  %v128 = vld [vmem:[%s1 + $0x178] sm:$0xf]
  %v129 = vld [vmem:[%s1 + $0x17c] sm:$0xf]
  %v130 = vld [vmem:[%s1 + $0x180] sm:$0xf]
  %v131 = vld [vmem:[%s1 + $0x184] sm:$0xf]
  %v132 = vld [vmem:[%s1 + $0x188] sm:$0xf]
  %v133 = vld [vmem:[%s1 + $0x18c] sm:$0xf]
  %v134 = vld [vmem:[%s1 + $0x190] sm:$0xf]
  %v135 = vld [vmem:[%s1 + $0x194] sm:$0xf]
  %v136 = vld [vmem:[%s1 + $0x198] sm:$0xf]
  %v137 = vld [vmem:[%s1 + $0x19c] sm:$0xf]
  %v138 = vld [vmem:[%s1 + $0x1a0] sm:$0xf]
  %v139 = vld [vmem:[%s1 + $0x1a4] sm:$0xf]
  %v140 = vld [vmem:[%s1 + $0x1a8] sm:$0xf]
  %v141 = vld [vmem:[%s1 + $0x1ac] sm:$0xf]
  %v142 = vld [vmem:[%s1 + $0x1b0] sm:$0xf]
  %v143 = vld [vmem:[%s1 + $0x1b4] sm:$0xf]
  %v144 = vld [vmem:[%s1 + $0x1b8] sm:$0xf]
  %v145 = vld [vmem:[%s1 + $0x1bc] sm:$0xf]
  %v146 = vld [vmem:[%s1 + $0x1c0] sm:$0xf]
  %v147 = vld [vmem:[%s1 + $0x1c4] sm:$0xf]
  %v148 = vld [vmem:[%s1 + $0x1c8] sm:$0xf]
  %v149 = vld [vmem:[%s1 + $0x1cc] sm:$0xf]
  %v150 = vld [vmem:[%s1 + $0x1d0] sm:$0xf]
  %v151 = vld [vmem:[%s1 + $0x1d4] sm:$0xf]
  %v152 = vld [vmem:[%s1 + $0x1d8] sm:$0xf]
  %v153 = vld [vmem:[%s1 + $0x1dc] sm:$0xf]
  %v154 = vld [vmem:[%s1 + $0x1e0] sm:$0xf]
  %v155 = vld [vmem:[%s1 + $0x1e4] sm:$0xf]
  %v156 = vld [vmem:[%s1 + $0x1e8] sm:$0xf]
  %v157 = vld [vmem:[%s1 + $0x1ec] sm:$0xf]
  %v158 = vld [vmem:[%s1 + $0x1f0] sm:$0xf]
  %v159 = vld [vmem:[%s1 + $0x1f4] sm:$0xf]
  %v160 = vld [vmem:[%s1 + $0x1f8] sm:$0xf]
  %v161 = vld [vmem:[%s1 + $0x1fc] sm:$0xf]
  %v162 = vld [vmem:[%s3] sm:$0x1]
  %v163 = vlaneseq
  %v164 = vshrl.u32 %v163, 7
  %v165 = vsub.s32 0, %v164
  %v166 = vrot.slane %v162, %v165
  %v295 = vunpack.c.l.b16 %v34
  %v296 = vunpack.c.l.b16 %v35
  %v297 = vunpack.c.l.b16 %v36
  %v298 = vunpack.c.l.b16 %v37
  %v299 = vunpack.c.l.b16 %v38
  %v300 = vunpack.c.l.b16 %v39
  %v301 = vunpack.c.l.b16 %v40
  %v302 = vunpack.c.l.b16 %v41
  %v303 = vunpack.c.l.b16 %v42
  %v304 = vunpack.c.l.b16 %v43
  %v305 = vunpack.c.l.b16 %v44
  %v306 = vunpack.c.l.b16 %v45
  %v307 = vunpack.c.l.b16 %v46
  %v308 = vunpack.c.l.b16 %v47
  %v309 = vunpack.c.l.b16 %v48
  %v310 = vunpack.c.l.b16 %v49
  %v311 = vunpack.c.l.b16 %v50
  %v312 = vunpack.c.l.b16 %v51
  %v313 = vunpack.c.l.b16 %v52
  %v314 = vunpack.c.l.b16 %v53
  %v315 = vunpack.c.l.b16 %v54
  %v316 = vunpack.c.l.b16 %v55
  %v317 = vunpack.c.l.b16 %v56
  %v318 = vunpack.c.l.b16 %v57
  %v319 = vunpack.c.l.b16 %v58
  %v320 = vunpack.c.l.b16 %v59
  %v321 = vunpack.c.l.b16 %v60
  %v322 = vunpack.c.l.b16 %v61
  %v323 = vunpack.c.l.b16 %v62
  %v324 = vunpack.c.l.b16 %v63
  %v325 = vunpack.c.l.b16 %v64
  %v326 = vunpack.c.l.b16 %v65
  %v327 = vunpack.c.l.b16 %v66
  %v328 = vunpack.c.l.b16 %v67
  %v329 = vunpack.c.l.b16 %v68
  %v330 = vunpack.c.l.b16 %v69
  %v331 = vunpack.c.l.b16 %v70
  %v332 = vunpack.c.l.b16 %v71
  %v333 = vunpack.c.l.b16 %v72
  %v334 = vunpack.c.l.b16 %v73
  %v335 = vunpack.c.l.b16 %v74
  %v336 = vunpack.c.l.b16 %v75
  %v337 = vunpack.c.l.b16 %v76
  %v338 = vunpack.c.l.b16 %v77
  %v339 = vunpack.c.l.b16 %v78
  %v340 = vunpack.c.l.b16 %v79
  %v341 = vunpack.c.l.b16 %v80
  %v342 = vunpack.c.l.b16 %v81
  %v343 = vunpack.c.l.b16 %v82
  %v344 = vunpack.c.l.b16 %v83
  %v345 = vunpack.c.l.b16 %v84
  %v346 = vunpack.c.l.b16 %v85
  %v347 = vunpack.c.l.b16 %v86
  %v348 = vunpack.c.l.b16 %v87
  %v349 = vunpack.c.l.b16 %v88
  %v350 = vunpack.c.l.b16 %v89
  %v351 = vunpack.c.l.b16 %v90
  %v352 = vunpack.c.l.b16 %v91
  %v353 = vunpack.c.l.b16 %v92
  %v354 = vunpack.c.l.b16 %v93
  %v355 = vunpack.c.l.b16 %v94
  %v356 = vunpack.c.l.b16 %v95
  %v357 = vunpack.c.l.b16 %v96
  %v358 = vunpack.c.l.b16 %v97
  %v359 = vunpack.c.l.b16 %v98
  %v360 = vunpack.c.l.b16 %v99
  %v361 = vunpack.c.l.b16 %v100
  %v362 = vunpack.c.l.b16 %v101
  %v363 = vunpack.c.l.b16 %v102
  %v364 = vunpack.c.l.b16 %v103
  %v365 = vunpack.c.l.b16 %v104
  %v366 = vunpack.c.l.b16 %v105
  %v367 = vunpack.c.l.b16 %v106
  %v368 = vunpack.c.l.b16 %v107
  %v369 = vunpack.c.l.b16 %v108
  %v370 = vunpack.c.l.b16 %v109
  %v371 = vunpack.c.l.b16 %v110
  %v372 = vunpack.c.l.b16 %v111
  %v373 = vunpack.c.l.b16 %v112
  %v374 = vunpack.c.l.b16 %v113
  %v375 = vunpack.c.l.b16 %v114
  %v376 = vunpack.c.l.b16 %v115
  %v377 = vunpack.c.l.b16 %v116
  %v378 = vunpack.c.l.b16 %v117
  %v379 = vunpack.c.l.b16 %v118
  %v380 = vunpack.c.l.b16 %v119
  %v381 = vunpack.c.l.b16 %v120
  %v382 = vunpack.c.l.b16 %v121
  %v383 = vunpack.c.l.b16 %v122
  %v384 = vunpack.c.l.b16 %v123
  %v385 = vunpack.c.l.b16 %v124
  %v386 = vunpack.c.l.b16 %v125
  %v387 = vunpack.c.l.b16 %v126
  %v388 = vunpack.c.l.b16 %v127
  %v389 = vunpack.c.l.b16 %v128
  %v390 = vunpack.c.l.b16 %v129
  %v391 = vunpack.c.l.b16 %v130
  %v392 = vunpack.c.l.b16 %v131
  %v393 = vunpack.c.l.b16 %v132
  %v394 = vunpack.c.l.b16 %v133
  %v395 = vunpack.c.l.b16 %v134
  %v396 = vunpack.c.l.b16 %v135
  %v397 = vunpack.c.l.b16 %v136
  %v398 = vunpack.c.l.b16 %v137
  %v399 = vunpack.c.l.b16 %v138
  %v400 = vunpack.c.l.b16 %v139
  %v401 = vunpack.c.l.b16 %v140
  %v402 = vunpack.c.l.b16 %v141
  %v403 = vunpack.c.l.b16 %v142
  %v404 = vunpack.c.l.b16 %v143
  %v405 = vunpack.c.l.b16 %v144
  %v406 = vunpack.c.l.b16 %v145
  %v407 = vunpack.c.l.b16 %v146
  %v408 = vunpack.c.l.b16 %v147
  %v409 = vunpack.c.l.b16 %v148
  %v410 = vunpack.c.l.b16 %v149
  %v411 = vunpack.c.l.b16 %v150
  %v412 = vunpack.c.l.b16 %v151
  %v413 = vunpack.c.l.b16 %v152
  %v414 = vunpack.c.l.b16 %v153
  %v415 = vunpack.c.l.b16 %v154
  %v416 = vunpack.c.l.b16 %v155
  %v417 = vunpack.c.l.b16 %v156
  %v418 = vunpack.c.l.b16 %v157
  %v419 = vunpack.c.l.b16 %v158
  %v420 = vunpack.c.l.b16 %v159
  %v421 = vunpack.c.l.b16 %v160
  %v422 = vunpack.c.l.b16 %v161
  %v423 = vpack.c.b16 %v296, %v295
  %v424 = vpack.c.b16 %v298, %v297
  %v425 = vpack.c.b16 %v300, %v299
  %v426 = vpack.c.b16 %v302, %v301
  %v427 = vpack.c.b16 %v304, %v303
  %v428 = vpack.c.b16 %v306, %v305
  %v429 = vpack.c.b16 %v308, %v307
  %v430 = vpack.c.b16 %v310, %v309
  %v431 = vpack.c.b16 %v312, %v311
  %v432 = vpack.c.b16 %v314, %v313
  %v433 = vpack.c.b16 %v316, %v315
  %v434 = vpack.c.b16 %v318, %v317
  %v435 = vpack.c.b16 %v320, %v319
  %v436 = vpack.c.b16 %v322, %v321
  %v437 = vpack.c.b16 %v324, %v323
  %v438 = vpack.c.b16 %v326, %v325
  %v439 = vpack.c.b16 %v328, %v327
  %v440 = vpack.c.b16 %v330, %v329
  %v441 = vpack.c.b16 %v332, %v331
  %v442 = vpack.c.b16 %v334, %v333
  %v443 = vpack.c.b16 %v336, %v335
  %v444 = vpack.c.b16 %v338, %v337
  %v445 = vpack.c.b16 %v340, %v339
  %v446 = vpack.c.b16 %v342, %v341
  %v447 = vpack.c.b16 %v344, %v343
  %v448 = vpack.c.b16 %v346, %v345
  %v449 = vpack.c.b16 %v348, %v347
  %v450 = vpack.c.b16 %v350, %v349
  %v451 = vpack.c.b16 %v352, %v351
  %v452 = vpack.c.b16 %v354, %v353
  %v453 = vpack.c.b16 %v356, %v355
  %v454 = vpack.c.b16 %v358, %v357
  %v455 = vpack.c.b16 %v360, %v359
  %v456 = vpack.c.b16 %v362, %v361
  %v457 = vpack.c.b16 %v364, %v363
  %v458 = vpack.c.b16 %v366, %v365
  %v459 = vpack.c.b16 %v368, %v367
  %v460 = vpack.c.b16 %v370, %v369
  %v461 = vpack.c.b16 %v372, %v371
  %v462 = vpack.c.b16 %v374, %v373
  %v463 = vpack.c.b16 %v376, %v375
  %v464 = vpack.c.b16 %v378, %v377
  %v465 = vpack.c.b16 %v380, %v379
  %v466 = vpack.c.b16 %v382, %v381
  %v467 = vpack.c.b16 %v384, %v383
  %v468 = vpack.c.b16 %v386, %v385
  %v469 = vpack.c.b16 %v388, %v387
  %v470 = vpack.c.b16 %v390, %v389
  %v471 = vpack.c.b16 %v392, %v391
  %v472 = vpack.c.b16 %v394, %v393
  %v473 = vpack.c.b16 %v396, %v395
  %v474 = vpack.c.b16 %v398, %v397
  %v475 = vpack.c.b16 %v400, %v399
  %v476 = vpack.c.b16 %v402, %v401
  %v477 = vpack.c.b16 %v404, %v403
  %v478 = vpack.c.b16 %v406, %v405
  %v479 = vpack.c.b16 %v408, %v407
  %v480 = vpack.c.b16 %v410, %v409
  %v481 = vpack.c.b16 %v412, %v411
  %v482 = vpack.c.b16 %v414, %v413
  %v483 = vpack.c.b16 %v416, %v415
  %v484 = vpack.c.b16 %v418, %v417
  %v485 = vpack.c.b16 %v420, %v419
  %v486 = vpack.c.b16 %v422, %v421
  %551 = vmatprep.subr.bf16.mxu0 0
  %552 = vmatpush1.bf16.msra.mxu0 %v423
  %553 = vmatprep.subr.bf16.mxu0 0
  %554 = vmatpush1.bf16.msra.mxu0 %v424
  %555 = vmatprep.subr.bf16.mxu0 0
  %556 = vmatpush1.bf16.msra.mxu0 %v425
  %557 = vmatprep.subr.bf16.mxu0 0
  %558 = vmatpush1.bf16.msra.mxu0 %v426
  %559 = vmatprep.subr.bf16.mxu0 0
  %560 = vmatpush1.bf16.msra.mxu0 %v427
  %561 = vmatprep.subr.bf16.mxu0 0
  %562 = vmatpush1.bf16.msra.mxu0 %v428
  %563 = vmatprep.subr.bf16.mxu0 0
  %564 = vmatpush1.bf16.msra.mxu0 %v429
  %565 = vmatprep.subr.bf16.mxu0 0
  %566 = vmatpush1.bf16.msra.mxu0 %v430
  %567 = vmatprep.subr.bf16.mxu0 0
  %568 = vmatpush1.bf16.msra.mxu0 %v431
  %569 = vmatprep.subr.bf16.mxu0 0
  %570 = vmatpush1.bf16.msra.mxu0 %v432
  %571 = vmatprep.subr.bf16.mxu0 0
  %572 = vmatpush1.bf16.msra.mxu0 %v433
  %573 = vmatprep.subr.bf16.mxu0 0
  %574 = vmatpush1.bf16.msra.mxu0 %v434
  %575 = vmatprep.subr.bf16.mxu0 0
  %576 = vmatpush1.bf16.msra.mxu0 %v435
  %577 = vmatprep.subr.bf16.mxu0 0
  %578 = vmatpush1.bf16.msra.mxu0 %v436
  %579 = vmatprep.subr.bf16.mxu0 0
  %580 = vmatpush1.bf16.msra.mxu0 %v437
  %581 = vmatprep.subr.bf16.mxu0 0
  %582 = vmatpush1.bf16.msra.mxu0 %v438
  %583 = vmatprep.mubr.bf16.mxu0 %v27
  %584 = vmatmul.mubr.bf16.gmra.mrb[0].mxu0 %v26
  %v585 = vpop.f32.mrb[0].mxu0
  %v586 = vadd.f32 %v166, %v585
  %v587 = vpop.f32.mrb[0].mxu0
  %v588 = vpop.f32.mrb[0].mxu0
  %v589 = vpop.f32.mrb[0].mxu0
  %590 = vdwg.mxu0
  %591 = vmatprep.subr.bf16.mxu0 0
  %592 = vmatpush1.bf16.msra.mxu0 %v439
  %593 = vmatprep.subr.bf16.mxu0 0
  %594 = vmatpush1.bf16.msra.mxu0 %v440
  %595 = vmatprep.subr.bf16.mxu0 0
  %596 = vmatpush1.bf16.msra.mxu0 %v441
  %597 = vmatprep.subr.bf16.mxu0 0
  %598 = vmatpush1.bf16.msra.mxu0 %v442
  %599 = vmatprep.subr.bf16.mxu0 0
  %600 = vmatpush1.bf16.msra.mxu0 %v443
  %601 = vmatprep.subr.bf16.mxu0 0
  %602 = vmatpush1.bf16.msra.mxu0 %v444
  %603 = vmatprep.subr.bf16.mxu0 0
  %604 = vmatpush1.bf16.msra.mxu0 %v445
  %605 = vmatprep.subr.bf16.mxu0 0
  %606 = vmatpush1.bf16.msra.mxu0 %v446
  %607 = vmatprep.subr.bf16.mxu0 0
  %608 = vmatpush1.bf16.msra.mxu0 %v447
  %609 = vmatprep.subr.bf16.mxu0 0
  %610 = vmatpush1.bf16.msra.mxu0 %v448
  %611 = vmatprep.subr.bf16.mxu0 0
  %612 = vmatpush1.bf16.msra.mxu0 %v449
  %613 = vmatprep.subr.bf16.mxu0 0
  %614 = vmatpush1.bf16.msra.mxu0 %v450
  %615 = vmatprep.subr.bf16.mxu0 0
  %616 = vmatpush1.bf16.msra.mxu0 %v451
  %617 = vmatprep.subr.bf16.mxu0 0
  %618 = vmatpush1.bf16.msra.mxu0 %v452
  %619 = vmatprep.subr.bf16.mxu0 0
  %620 = vmatpush1.bf16.msra.mxu0 %v453
  %621 = vmatprep.subr.bf16.mxu0 0
  %622 = vmatpush1.bf16.msra.mxu0 %v454
  %623 = vmatprep.mubr.bf16.mxu0 %v29
  %624 = vmatmul.mubr.bf16.gmra.mrb[0].mxu0 %v28
  %v625 = vpop.f32.mrb[0].mxu0
  %v626 = vadd.f32 %v586, %v625
  %v627 = vpop.f32.mrb[0].mxu0
  %v628 = vpop.f32.mrb[0].mxu0
  %v629 = vpop.f32.mrb[0].mxu0
  %630 = vdwg.mxu0
  %631 = vmatprep.subr.bf16.mxu0 0
  %632 = vmatpush1.bf16.msra.mxu0 %v455
  %633 = vmatprep.subr.bf16.mxu0 0
  %634 = vmatpush1.bf16.msra.mxu0 %v456
  %635 = vmatprep.subr.bf16.mxu0 0
  %636 = vmatpush1.bf16.msra.mxu0 %v457
  %637 = vmatprep.subr.bf16.mxu0 0
  %638 = vmatpush1.bf16.msra.mxu0 %v458
  %639 = vmatprep.subr.bf16.mxu0 0
  %640 = vmatpush1.bf16.msra.mxu0 %v459
  %641 = vmatprep.subr.bf16.mxu0 0
  %642 = vmatpush1.bf16.msra.mxu0 %v460
  %643 = vmatprep.subr.bf16.mxu0 0
  %644 = vmatpush1.bf16.msra.mxu0 %v461
  %645 = vmatprep.subr.bf16.mxu0 0
  %646 = vmatpush1.bf16.msra.mxu0 %v462
  %647 = vmatprep.subr.bf16.mxu0 0
  %648 = vmatpush1.bf16.msra.mxu0 %v463
  %649 = vmatprep.subr.bf16.mxu0 0
  %650 = vmatpush1.bf16.msra.mxu0 %v464
  %651 = vmatprep.subr.bf16.mxu0 0
  %652 = vmatpush1.bf16.msra.mxu0 %v465
  %653 = vmatprep.subr.bf16.mxu0 0
  %654 = vmatpush1.bf16.msra.mxu0 %v466
  %655 = vmatprep.subr.bf16.mxu0 0
  %656 = vmatpush1.bf16.msra.mxu0 %v467
  %657 = vmatprep.subr.bf16.mxu0 0
  %658 = vmatpush1.bf16.msra.mxu0 %v468
  %659 = vmatprep.subr.bf16.mxu0 0
  %660 = vmatpush1.bf16.msra.mxu0 %v469
  %661 = vmatprep.subr.bf16.mxu0 0
  %662 = vmatpush1.bf16.msra.mxu0 %v470
  %663 = vmatprep.mubr.bf16.mxu0 %v31
  %664 = vmatmul.mubr.bf16.gmra.mrb[0].mxu0 %v30
  %v665 = vpop.f32.mrb[0].mxu0
  %v666 = vadd.f32 %v626, %v665
  %v667 = vpop.f32.mrb[0].mxu0
  %v668 = vpop.f32.mrb[0].mxu0
  %v669 = vpop.f32.mrb[0].mxu0
  %670 = vdwg.mxu0
  %671 = vmatprep.subr.bf16.mxu0 0
  %672 = vmatpush1.bf16.msra.mxu0 %v471
  %673 = vmatprep.subr.bf16.mxu0 0
  %674 = vmatpush1.bf16.msra.mxu0 %v472
  %675 = vmatprep.subr.bf16.mxu0 0
  %676 = vmatpush1.bf16.msra.mxu0 %v473
  %677 = vmatprep.subr.bf16.mxu0 0
  %678 = vmatpush1.bf16.msra.mxu0 %v474
  %679 = vmatprep.subr.bf16.mxu0 0
  %680 = vmatpush1.bf16.msra.mxu0 %v475
  %681 = vmatprep.subr.bf16.mxu0 0
  %682 = vmatpush1.bf16.msra.mxu0 %v476
  %683 = vmatprep.subr.bf16.mxu0 0
  %684 = vmatpush1.bf16.msra.mxu0 %v477
  %685 = vmatprep.subr.bf16.mxu0 0
  %686 = vmatpush1.bf16.msra.mxu0 %v478
  %687 = vmatprep.subr.bf16.mxu0 0
  %688 = vmatpush1.bf16.msra.mxu0 %v479
  %689 = vmatprep.subr.bf16.mxu0 0
  %690 = vmatpush1.bf16.msra.mxu0 %v480
  %691 = vmatprep.subr.bf16.mxu0 0
  %692 = vmatpush1.bf16.msra.mxu0 %v481
  %693 = vmatprep.subr.bf16.mxu0 0
  %694 = vmatpush1.bf16.msra.mxu0 %v482
  %695 = vmatprep.subr.bf16.mxu0 0
  %696 = vmatpush1.bf16.msra.mxu0 %v483
  %697 = vmatprep.subr.bf16.mxu0 0
  %698 = vmatpush1.bf16.msra.mxu0 %v484
  %699 = vmatprep.subr.bf16.mxu0 0
  %700 = vmatpush1.bf16.msra.mxu0 %v485
  %701 = vmatprep.subr.bf16.mxu0 0
  %702 = vmatpush1.bf16.msra.mxu0 %v486
  %703 = vmatprep.mubr.bf16.mxu0 %v33
  %704 = vmatmul.mubr.bf16.gmra.mrb[0].mxu0 %v32
  %v705 = vpop.f32.mrb[0].mxu0
  %v706 = vadd.f32 %v666, %v705
  %v707 = vpop.f32.mrb[0].mxu0
  %v708 = vpop.f32.mrb[0].mxu0
  %v709 = vpop.f32.mrb[0].mxu0
  %710 = vdwg.mxu0
  %v711 = vmax.f32 %v706, 0.0
  %v712 = vpack.c.bf16 %v711, %v711
  %v713 = vld [vmem:[%s2] sm:$0xf]
  %v714 = vld [vmem:[%s2 + $0x4] sm:$0xf]
  %v715 = vld [vmem:[%s2 + $0x8] sm:$0xf]
  %v716 = vld [vmem:[%s2 + $0xc] sm:$0xf]
  %v717 = vld [vmem:[%s2 + $0x10] sm:$0xf]
  %v718 = vld [vmem:[%s2 + $0x14] sm:$0xf]
  %v719 = vld [vmem:[%s2 + $0x18] sm:$0xf]
  %v720 = vld [vmem:[%s2 + $0x1c] sm:$0xf]
  %v721 = vld [vmem:[%s2 + $0x20] sm:$0xf]
  %v722 = vld [vmem:[%s2 + $0x24] sm:$0xf]
  %v723 = vld [vmem:[%s2 + $0x28] sm:$0xf]
  %v724 = vld [vmem:[%s2 + $0x2c] sm:$0xf]
  %v725 = vld [vmem:[%s2 + $0x30] sm:$0xf]
  %v726 = vld [vmem:[%s2 + $0x34] sm:$0xf]
  %v727 = vld [vmem:[%s2 + $0x38] sm:$0xf]
  %v728 = vld [vmem:[%s2 + $0x3c] sm:$0xf]
  %v729 = vld [vmem:[%s3 + $0x1] sm:$0x1]
  %v730 = vlaneseq
  %v731 = vshrl.u32 %v730, 7
  %v732 = vsub.s32 0, %v731
  %v733 = vrot.slane %v729, %v732
  %v750 = vunpack.c.l.b16 %v713
  %v751 = vunpack.c.l.b16 %v714
  %v752 = vunpack.c.l.b16 %v715
  %v753 = vunpack.c.l.b16 %v716
  %v754 = vunpack.c.l.b16 %v717
  %v755 = vunpack.c.l.b16 %v718
  %v756 = vunpack.c.l.b16 %v719
  %v757 = vunpack.c.l.b16 %v720
  %v758 = vunpack.c.l.b16 %v721
  %v759 = vunpack.c.l.b16 %v722
  %v760 = vunpack.c.l.b16 %v723
  %v761 = vunpack.c.l.b16 %v724
  %v762 = vunpack.c.l.b16 %v725
  %v763 = vunpack.c.l.b16 %v726
  %v764 = vunpack.c.l.b16 %v727
  %v765 = vunpack.c.l.b16 %v728
  %v766 = vpack.c.b16 %v751, %v750
  %v767 = vpack.c.b16 %v753, %v752
  %v768 = vpack.c.b16 %v755, %v754
  %v769 = vpack.c.b16 %v757, %v756
  %v770 = vpack.c.b16 %v759, %v758
  %v771 = vpack.c.b16 %v761, %v760
  %v772 = vpack.c.b16 %v763, %v762
  %v773 = vpack.c.b16 %v765, %v764
  %782 = vmatprep.subr.bf16.mxu0 0
  %783 = vmatpush1.bf16.msra.mxu0 %v766
  %784 = vmatprep.subr.bf16.mxu0 0
  %785 = vmatpush1.bf16.msra.mxu0 %v767
  %786 = vmatprep.subr.bf16.mxu0 0
  %787 = vmatpush1.bf16.msra.mxu0 %v768
  %788 = vmatprep.subr.bf16.mxu0 0
  %789 = vmatpush1.bf16.msra.mxu0 %v769
  %790 = vmatprep.subr.bf16.mxu0 0
  %791 = vmatpush1.bf16.msra.mxu0 %v770
  %792 = vmatprep.subr.bf16.mxu0 0
  %793 = vmatpush1.bf16.msra.mxu0 %v771
  %794 = vmatprep.subr.bf16.mxu0 0
  %795 = vmatpush1.bf16.msra.mxu0 %v772
  %796 = vmatprep.subr.bf16.mxu0 0
  %797 = vmatpush1.bf16.msra.mxu0 %v773
  %798 = vmatprep.subr.bf16.mxu0 0
  %799 = vmatpush1.bf16.msra.mxu0 0
  %800 = vmatprep.subr.bf16.mxu0 0
  %801 = vmatpush1.bf16.msra.mxu0 0
  %802 = vmatprep.subr.bf16.mxu0 0
  %803 = vmatpush1.bf16.msra.mxu0 0
  %804 = vmatprep.subr.bf16.mxu0 0
  %805 = vmatpush1.bf16.msra.mxu0 0
  %806 = vmatprep.subr.bf16.mxu0 0
  %807 = vmatpush1.bf16.msra.mxu0 0
  %808 = vmatprep.subr.bf16.mxu0 0
  %809 = vmatpush1.bf16.msra.mxu0 0
  %810 = vmatprep.subr.bf16.mxu0 0
  %811 = vmatpush1.bf16.msra.mxu0 0
  %812 = vmatprep.subr.bf16.mxu0 0
  %813 = vmatpush1.bf16.msra.mxu0 0
  %814 = vmatprep.mubr.bf16.mxu0 0
  %815 = vmatmul.mubr.bf16.gmra.mrb[0].mxu0 %v712
  %v816 = vpop.f32.mrb[0].mxu0
  %v817 = vadd.f32 %v733, %v816
  %v818 = vpop.f32.mrb[0].mxu0
  %v819 = vpop.f32.mrb[0].mxu0
  %v820 = vpop.f32.mrb[0].mxu0
  %821 = vdwg.mxu0
  %v822 = vmax.f32 %v817, 0.0
  %v823 = vpack.c.bf16 %v822, %v822
  %s824 = scalar_lea.vmem %s2, 64
  %v825 = vld [vmem:[%s824] sm:$0xf]
  %v826 = vld [vmem:[%s824 + $0x4] sm:$0xf]
  %v827 = vld [vmem:[%s824 + $0x8] sm:$0xf]
  %v828 = vld [vmem:[%s824 + $0xc] sm:$0xf]
  %v829 = vld [vmem:[%s824 + $0x10] sm:$0xf]
  %v830 = vld [vmem:[%s824 + $0x14] sm:$0xf]
  %v831 = vld [vmem:[%s824 + $0x18] sm:$0xf]
  %v832 = vld [vmem:[%s824 + $0x1c] sm:$0xf]
  %v833 = vld [vmem:[%s824 + $0x20] sm:$0xf]
  %v834 = vld [vmem:[%s824 + $0x24] sm:$0xf]
  %v835 = vld [vmem:[%s824 + $0x28] sm:$0xf]
  %v836 = vld [vmem:[%s824 + $0x2c] sm:$0xf]
  %v837 = vld [vmem:[%s824 + $0x30] sm:$0xf]
  %v838 = vld [vmem:[%s824 + $0x34] sm:$0xf]
  %v839 = vld [vmem:[%s824 + $0x38] sm:$0xf]
  %v840 = vld [vmem:[%s824 + $0x3c] sm:$0xf]
  %v841 = vld [vmem:[%s3 + $0x2] sm:$0x1]
  %v842 = vlaneseq
  %v843 = vshrl.u32 %v842, 7
  %v844 = vsub.s32 0, %v843
  %v845 = vrot.slane %v841, %v844
  %v862 = vunpack.c.l.b16 %v825
  %v863 = vunpack.c.l.b16 %v826
  %v864 = vunpack.c.l.b16 %v827
  %v865 = vunpack.c.l.b16 %v828
  %v866 = vunpack.c.l.b16 %v829
  %v867 = vunpack.c.l.b16 %v830
  %v868 = vunpack.c.l.b16 %v831
  %v869 = vunpack.c.l.b16 %v832
  %v870 = vunpack.c.l.b16 %v833
  %v871 = vunpack.c.l.b16 %v834
  %v872 = vunpack.c.l.b16 %v835
  %v873 = vunpack.c.l.b16 %v836
  %v874 = vunpack.c.l.b16 %v837
  %v875 = vunpack.c.l.b16 %v838
  %v876 = vunpack.c.l.b16 %v839
  %v877 = vunpack.c.l.b16 %v840
  %v878 = vpack.c.b16 %v863, %v862
  %v879 = vpack.c.b16 %v865, %v864
  %v880 = vpack.c.b16 %v867, %v866
  %v881 = vpack.c.b16 %v869, %v868
  %v882 = vpack.c.b16 %v871, %v870
  %v883 = vpack.c.b16 %v873, %v872
  %v884 = vpack.c.b16 %v875, %v874
  %v885 = vpack.c.b16 %v877, %v876
  %894 = vmatprep.subr.bf16.mxu0 0
  %895 = vmatpush1.bf16.msra.mxu0 %v878
  %896 = vmatprep.subr.bf16.mxu0 0
  %897 = vmatpush1.bf16.msra.mxu0 %v879
  %898 = vmatprep.subr.bf16.mxu0 0
  %899 = vmatpush1.bf16.msra.mxu0 %v880
  %900 = vmatprep.subr.bf16.mxu0 0
  %901 = vmatpush1.bf16.msra.mxu0 %v881
  %902 = vmatprep.subr.bf16.mxu0 0
  %903 = vmatpush1.bf16.msra.mxu0 %v882
  %904 = vmatprep.subr.bf16.mxu0 0
  %905 = vmatpush1.bf16.msra.mxu0 %v883
  %906 = vmatprep.subr.bf16.mxu0 0
  %907 = vmatpush1.bf16.msra.mxu0 %v884
  %908 = vmatprep.subr.bf16.mxu0 0
  %909 = vmatpush1.bf16.msra.mxu0 %v885
  %910 = vmatprep.subr.bf16.mxu0 0
  %911 = vmatpush1.bf16.msra.mxu0 0
  %912 = vmatprep.subr.bf16.mxu0 0
  %913 = vmatpush1.bf16.msra.mxu0 0
  %914 = vmatprep.subr.bf16.mxu0 0
  %915 = vmatpush1.bf16.msra.mxu0 0
  %916 = vmatprep.subr.bf16.mxu0 0
  %917 = vmatpush1.bf16.msra.mxu0 0
  %918 = vmatprep.subr.bf16.mxu0 0
  %919 = vmatpush1.bf16.msra.mxu0 0
  %920 = vmatprep.subr.bf16.mxu0 0
  %921 = vmatpush1.bf16.msra.mxu0 0
  %922 = vmatprep.subr.bf16.mxu0 0
  %923 = vmatpush1.bf16.msra.mxu0 0
  %924 = vmatprep.subr.bf16.mxu0 0
  %925 = vmatpush1.bf16.msra.mxu0 0
  %926 = vmatprep.mubr.bf16.mxu0 0
  %927 = vmatmul.mubr.bf16.gmra.mrb[0].mxu0 %v823
  %v928 = vpop.f32.mrb[0].mxu0
  %v929 = vadd.f32 %v845, %v928
  %v930 = vpop.f32.mrb[0].mxu0
  %v931 = vpop.f32.mrb[0].mxu0
  %v932 = vpop.f32.mrb[0].mxu0
  %933 = vdwg.mxu0
  %v934 = vmax.f32 %v929, 0.0
  %v935 = vpack.c.bf16 %v934, %v934
  %s936 = scalar_lea.vmem %s2, 128
  %v937 = vld [vmem:[%s936] sm:$0xf]
  %v938 = vld [vmem:[%s936 + $0x4] sm:$0xf]
  %v939 = vld [vmem:[%s936 + $0x8] sm:$0xf]
  %v940 = vld [vmem:[%s936 + $0xc] sm:$0xf]
  %v941 = vld [vmem:[%s936 + $0x10] sm:$0xf]
  %v942 = vld [vmem:[%s936 + $0x14] sm:$0xf]
  %v943 = vld [vmem:[%s936 + $0x18] sm:$0xf]
  %v944 = vld [vmem:[%s936 + $0x1c] sm:$0xf]
  %v945 = vld [vmem:[%s936 + $0x20] sm:$0xf]
  %v946 = vld [vmem:[%s936 + $0x24] sm:$0xf]
  %v947 = vld [vmem:[%s936 + $0x28] sm:$0xf]
  %v948 = vld [vmem:[%s936 + $0x2c] sm:$0xf]
  %v949 = vld [vmem:[%s936 + $0x30] sm:$0xf]
  %v950 = vld [vmem:[%s936 + $0x34] sm:$0xf]
  %v951 = vld [vmem:[%s936 + $0x38] sm:$0xf]
  %v952 = vld [vmem:[%s936 + $0x3c] sm:$0xf]
  %v953 = vld [vmem:[%s3 + $0x3] sm:$0x1]
  %v954 = vlaneseq
  %v955 = vshrl.u32 %v954, 7
  %v956 = vsub.s32 0, %v955
  %v957 = vrot.slane %v953, %v956
  %v974 = vunpack.c.l.b16 %v937
  %v975 = vunpack.c.l.b16 %v938
  %v976 = vunpack.c.l.b16 %v939
  %v977 = vunpack.c.l.b16 %v940
  %v978 = vunpack.c.l.b16 %v941
  %v979 = vunpack.c.l.b16 %v942
  %v980 = vunpack.c.l.b16 %v943
  %v981 = vunpack.c.l.b16 %v944
  %v982 = vunpack.c.l.b16 %v945
  %v983 = vunpack.c.l.b16 %v946
  %v984 = vunpack.c.l.b16 %v947
  %v985 = vunpack.c.l.b16 %v948
  %v986 = vunpack.c.l.b16 %v949
  %v987 = vunpack.c.l.b16 %v950
  %v988 = vunpack.c.l.b16 %v951
  %v989 = vunpack.c.l.b16 %v952
  %v990 = vpack.c.b16 %v975, %v974
  %v991 = vpack.c.b16 %v977, %v976
  %v992 = vpack.c.b16 %v979, %v978
  %v993 = vpack.c.b16 %v981, %v980
  %v994 = vpack.c.b16 %v983, %v982
  %v995 = vpack.c.b16 %v985, %v984
  %v996 = vpack.c.b16 %v987, %v986
  %v997 = vpack.c.b16 %v989, %v988
  %1006 = vmatprep.subr.bf16.mxu0 0
  %1007 = vmatpush1.bf16.msra.mxu0 %v990
  %1008 = vmatprep.subr.bf16.mxu0 0
  %1009 = vmatpush1.bf16.msra.mxu0 %v991
  %1010 = vmatprep.subr.bf16.mxu0 0
  %1011 = vmatpush1.bf16.msra.mxu0 %v992
  %1012 = vmatprep.subr.bf16.mxu0 0
  %1013 = vmatpush1.bf16.msra.mxu0 %v993
  %1014 = vmatprep.subr.bf16.mxu0 0
  %1015 = vmatpush1.bf16.msra.mxu0 %v994
  %1016 = vmatprep.subr.bf16.mxu0 0
  %1017 = vmatpush1.bf16.msra.mxu0 %v995
  %1018 = vmatprep.subr.bf16.mxu0 0
  %1019 = vmatpush1.bf16.msra.mxu0 %v996
  %1020 = vmatprep.subr.bf16.mxu0 0
  %1021 = vmatpush1.bf16.msra.mxu0 %v997
  %1022 = vmatprep.subr.bf16.mxu0 0
  %1023 = vmatpush1.bf16.msra.mxu0 0
  %1024 = vmatprep.subr.bf16.mxu0 0
  %1025 = vmatpush1.bf16.msra.mxu0 0
  %1026 = vmatprep.subr.bf16.mxu0 0
  %1027 = vmatpush1.bf16.msra.mxu0 0
  %1028 = vmatprep.subr.bf16.mxu0 0
  %1029 = vmatpush1.bf16.msra.mxu0 0
  %1030 = vmatprep.subr.bf16.mxu0 0
  %1031 = vmatpush1.bf16.msra.mxu0 0
  %1032 = vmatprep.subr.bf16.mxu0 0
  %1033 = vmatpush1.bf16.msra.mxu0 0
  %1034 = vmatprep.subr.bf16.mxu0 0
  %1035 = vmatpush1.bf16.msra.mxu0 0
  %1036 = vmatprep.subr.bf16.mxu0 0
  %1037 = vmatpush1.bf16.msra.mxu0 0
  %1038 = vmatprep.mubr.bf16.mxu0 0
  %1039 = vmatmul.mubr.bf16.gmra.mrb[0].mxu0 %v935
  %v1040 = vpop.f32.mrb[0].mxu0
  %v1041 = vadd.f32 %v957, %v1040
  %v1042 = vpop.f32.mrb[0].mxu0
  %v1043 = vpop.f32.mrb[0].mxu0
  %v1044 = vpop.f32.mrb[0].mxu0
  %1045 = vdwg.mxu0
  %v1046 = vpack.c.bf16 %v1041, %v1041
  %1047 = vst [vmem:[%s4] sm:$0xf] %v1046
  // Predicated region
  $region18: #{custom_mlp3.1} parent=0 // pred_check
    _
  $region19: #{custom_mlp3.1} parent=0 // pred_check_branch
    %1049 = sbr.rel (0) target = $region21
  $region20: #{custom_mlp3.1} parent=0 // pred_region
    _
  $region21: #{custom_mlp3.1} parent=0 // pred_fallthru
    _
  // Predicated region
  $region22: #{custom_mlp3.1} parent=0 // pred_check
    _
  $region23: #{custom_mlp3.1} parent=0 // pred_check_branch
    %1051 = sbr.rel (0) target = $region25
  $region24: #{custom_mlp3.1} parent=0 // pred_region
    _
  $region25: #{custom_mlp3.1} parent=0 // pred_fallthru
    _

</llo_original>
